<compile_context>
chip_gen: v7x
topology: tpu7x:2x2x1
jax: 0.10.0
libtpu: 0.0.40
codegen_flags: <defaults>
</compile_context>

<pallas_src>
import numpy as np
import jax
import jax.numpy as jnp
from jax import lax
from jax.experimental import pallas as pl
from jax.experimental.pallas import tpu as pltpu


# ----------------------------------------------------------------------------
# Tiling helpers
# ----------------------------------------------------------------------------

_VMEM_LIMIT_BYTES = 32 * 1024 * 1024   # safe scoped-VMEM budget on v5e/v6e/v7x


def _round_up(x, m):
    return ((x + m - 1) // m) * m


def _choose_tile_n(n, d, itemsize):
    """Row-tile size: multiple of 8, capped so double-buffered in/out tiles plus
    the f32 working copies stay well inside the scoped VMEM budget on all
    generations (v7x has only 64 MiB physical / 32 MiB scoped)."""
    bytes_per_row = d * max(int(itemsize), 4)          # f32 compute copy dominates
    budget = _VMEM_LIMIT_BYTES // 4                    # headroom for 2x(in+out) buffers
    max_rows = max(8, budget // max(1, 6 * bytes_per_row))
    tile = min(1024, max_rows, _round_up(n, 8))
    return max(8, (tile // 8) * 8)


def _pad_rows(x, n_pad):
    n = x.shape[0]
    if n_pad == n:
        return x
    return jnp.pad(x, ((0, n_pad - n), (0, 0)))


def _compiler_params(semantics):
    return pltpu.CompilerParams(
        dimension_semantics=semantics,
        vmem_limit_bytes=_VMEM_LIMIT_BYTES,
    )


# ----------------------------------------------------------------------------
# Kernels
# ----------------------------------------------------------------------------

def _layernorm_kernel(x_ref, g_ref, b_ref, o_ref):
    # One row tile per grid step; fused mean / var from the same loaded vregs.
    x = x_ref[...].astype(jnp.float32)                       # [T, D]
    inv_d = 1.0 / x.shape[-1]
    s = jnp.sum(x, axis=-1, keepdims=True)
    ss = jnp.sum(x * x, axis=-1, keepdims=True)
    mean = s * inv_d
    var = jnp.maximum(ss * inv_d - mean * mean, 0.0)         # biased, like torch
    inv = lax.rsqrt(var + 1e-5)
    o_ref[...] = ((x - mean) * inv * g_ref[...] + b_ref[...]).astype(o_ref.dtype)


def _batchnorm_stats_kernel(x_ref, s1_ref, s2_ref):
    # Grid over N tiles ("arbitrary"); outputs are resident accumulators.
    @pl.when(pl.program_id(0) == 0)
    def _():
        s1_ref[...] = jnp.zeros_like(s1_ref)
        s2_ref[...] = jnp.zeros_like(s2_ref)

    x = x_ref[...].astype(jnp.float32)                       # [T, C]
    s1_ref[...] += jnp.sum(x, axis=0, keepdims=True)
    s2_ref[...] += jnp.sum(x * x, axis=0, keepdims=True)


def _batchnorm_apply_kernel(x_ref, s1_ref, s2_ref, invn_ref, g_ref, b_ref, o_ref):
    # BatchNorm1d forward with batch statistics (training mode).
    x = x_ref[...].astype(jnp.float32)                       # [T, C]
    inv_n = invn_ref[...]                                    # [1, 1]
    mean = s1_ref[...] * inv_n                               # [1, C]
    var = jnp.maximum(s2_ref[...] * inv_n - mean * mean, 0.0)
    inv = lax.rsqrt(var + 1e-5)
    o_ref[...] = ((x - mean) * inv * g_ref[...] + b_ref[...]).astype(o_ref.dtype)
    # TODO(synk): nn.BatchNorm1d running_mean / running_var state updates are
    # not modeled (forward output is identical in training mode).


def _graphnorm_stats_kernel(x_ref, bidx_ref, s1_ref, s2_ref):
    # Segmented sum(x) and sum(x^2) per graph, accumulated across row tiles.
    @pl.when(pl.program_id(0) == 0)
    def _():
        s1_ref[...] = jnp.zeros_like(s1_ref)
        s2_ref[...] = jnp.zeros_like(s2_ref)

    x = x_ref[...].astype(jnp.float32)                       # [T, D]
    bidx = bidx_ref[...]                                     # [T, 1] int32
    t = x.shape[0]
    b_pad = s1_ref.shape[0]

    seg = lax.broadcasted_iota(jnp.int32, (t, b_pad), 1)     # [T, B_pad]
    a = (seg == bidx).astype(jnp.float32)                    # one-hot, no transpose

    dn = (((0,), (0,)), ((), ()))                            # contract over rows
    s1_ref[...] += lax.dot_general(a, x, dn, preferred_element_type=jnp.float32)
    s2_ref[...] += lax.dot_general(a, x * x, dn, preferred_element_type=jnp.float32)


def _graphnorm_apply_kernel(x_ref, bidx_ref, s1_ref, s2_ref, invc_ref,
                            ms_ref, w_ref, b_ref, o_ref):
    x = x_ref[...].astype(jnp.float32)                       # [T, D]
    bidx = bidx_ref[...]                                     # [T, 1]
    t = x.shape[0]
    b_pad = s1_ref.shape[0]

    # Tiny [B_pad, D] segment statistics (rsqrt on EUP, multiply later).
    invc = invc_ref[...]                                     # [B_pad, 1]
    mean = s1_ref[...] * invc                                # E[x]   per graph
    ex2 = s2_ref[...] * invc                                 # E[x^2] per graph
    m2 = mean * ms_ref[...]                                  # mean * mean_scale
    # E[(x - m2)^2] = E[x^2] - 2*m2*E[x] + m2^2
    var = jnp.maximum(ex2 - 2.0 * m2 * mean + m2 * m2, 0.0)
    inv_std = lax.rsqrt(var + 1e-6)                          # [B_pad, D]

    # Gather per-node stats with a one-hot matmul (no transpose, no divide).
    seg = lax.broadcasted_iota(jnp.int32, (t, b_pad), 1)
    a = (seg == bidx).astype(jnp.float32)                    # [T, B_pad]
    m2_node = jnp.dot(a, m2, preferred_element_type=jnp.float32)       # [T, D]
    inv_node = jnp.dot(a, inv_std, preferred_element_type=jnp.float32)  # [T, D]

    sub = x - m2_node
    o_ref[...] = (w_ref[...] * sub * inv_node + b_ref[...]).astype(o_ref.dtype)


# ----------------------------------------------------------------------------
# Wrappers
# ----------------------------------------------------------------------------

def layernorm_pallas(x, gamma, beta):
    x = jnp.asarray(x)
    n, d = x.shape
    tile = _choose_tile_n(n, d, x.dtype.itemsize)
    n_pad = _round_up(n, tile)
    n_tiles = n_pad // tile

    x_p = _pad_rows(x, n_pad)
    g = jnp.asarray(gamma, jnp.float32).reshape(1, d)
    b = jnp.asarray(beta, jnp.float32).reshape(1, d)

    out = pl.pallas_call(
        _layernorm_kernel,
        out_shape=jax.ShapeDtypeStruct((n_pad, d), x.dtype),
        grid=(n_tiles,),
        in_specs=[pl.BlockSpec((tile, d), lambda i: (i, 0)),
                  pl.BlockSpec((1, d), lambda i: (0, 0)),
                  pl.BlockSpec((1, d), lambda i: (0, 0))],
        out_specs=pl.BlockSpec((tile, d), lambda i: (i, 0)),
        compiler_params=_compiler_params(("parallel",)),
    )(x_p, g, b)
    return out[:n]


def batchnorm_pallas(x, gamma, beta):
    x = jnp.asarray(x)
    n, c = x.shape
    tile = _choose_tile_n(n, c, x.dtype.itemsize)
    n_pad = _round_up(n, tile)
    n_tiles = n_pad // tile

    x_p = _pad_rows(x, n_pad)                         # zero rows: no effect on sums
    g = jnp.asarray(gamma, jnp.float32).reshape(1, c)
    b = jnp.asarray(beta, jnp.float32).reshape(1, c)
    inv_n = jnp.full((1, 1), 1.0 / n, jnp.float32)    # true N (exclude padding)

    # Pass 1: batch sums (reduction axis -> "arbitrary", resident accumulators).
    s1, s2 = pl.pallas_call(
        _batchnorm_stats_kernel,
        out_shape=(jax.ShapeDtypeStruct((1, c), jnp.float32),
                   jax.ShapeDtypeStruct((1, c), jnp.float32)),
        grid=(n_tiles,),
        in_specs=[pl.BlockSpec((tile, c), lambda i: (i, 0))],
        out_specs=(pl.BlockSpec((1, c), lambda i: (0, 0)),
                   pl.BlockSpec((1, c), lambda i: (0, 0))),
        compiler_params=_compiler_params(("arbitrary",)),
    )(x_p)

    # Pass 2: normalize, row-parallel.
    out = pl.pallas_call(
        _batchnorm_apply_kernel,
        out_shape=jax.ShapeDtypeStruct((n_pad, c), x.dtype),
        grid=(n_tiles,),
        in_specs=[pl.BlockSpec((tile, c), lambda i: (i, 0)),
                  pl.BlockSpec((1, c), lambda i: (0, 0)),
                  pl.BlockSpec((1, c), lambda i: (0, 0)),
                  pl.BlockSpec((1, 1), lambda i: (0, 0)),
                  pl.BlockSpec((1, c), lambda i: (0, 0)),
                  pl.BlockSpec((1, c), lambda i: (0, 0))],
        out_specs=pl.BlockSpec((tile, c), lambda i: (i, 0)),
        compiler_params=_compiler_params(("parallel",)),
    )(x_p, s1, s2, inv_n, g, b)
    return out[:n]


def graphnorm_pallas(x, batch_num_nodes, weight, bias, mean_scale):
    x = jnp.asarray(x)
    n, d = x.shape
    counts = np.asarray(batch_num_nodes, dtype=np.int64)
    n_graphs = counts.shape[0]
    assert int(counts.sum()) == n

    tile = _choose_tile_n(n, d, x.dtype.itemsize)
    n_pad = _round_up(n, tile)
    n_tiles = n_pad // tile

    # Pad graphs to a sublane multiple (>=8); padded rows go to an extra
    # "overflow" segment so they never contaminate real graph statistics.
    b_pad = _round_up(n_graphs + 1, 8)
    bidx_np = np.full((n_pad, 1), n_graphs, dtype=np.int32)
    bidx_np[:n, 0] = np.repeat(np.arange(n_graphs, dtype=np.int32), counts)
    cnt_np = np.ones((b_pad, 1), dtype=np.float32)
    cnt_np[:n_graphs, 0] = counts.astype(np.float32)

    x_p = _pad_rows(x, n_pad)
    bidx = jnp.asarray(bidx_np)
    inv_cnt = jnp.asarray(1.0 / cnt_np)
    w = jnp.asarray(weight, jnp.float32).reshape(1, d)
    b = jnp.asarray(bias, jnp.float32).reshape(1, d)
    ms = jnp.asarray(mean_scale, jnp.float32).reshape(1, d)

    # Pass 1: per-graph sum(x), sum(x^2) accumulated over row tiles.
    s1, s2 = pl.pallas_call(
        _graphnorm_stats_kernel,
        out_shape=(jax.ShapeDtypeStruct((b_pad, d), jnp.float32),
                   jax.ShapeDtypeStruct((b_pad, d), jnp.float32)),
        grid=(n_tiles,),
        in_specs=[pl.BlockSpec((tile, d), lambda i: (i, 0)),
                  pl.BlockSpec((tile, 1), lambda i: (i, 0))],
        out_specs=(pl.BlockSpec((b_pad, d), lambda i: (0, 0)),
                   pl.BlockSpec((b_pad, d), lambda i: (0, 0))),
        compiler_params=_compiler_params(("arbitrary",)),
    )(x_p, bidx)

    # Pass 2: gather per-node mean / inv_std and apply affine, row-parallel.
    out = pl.pallas_call(
        _graphnorm_apply_kernel,
        out_shape=jax.ShapeDtypeStruct((n_pad, d), x.dtype),
        grid=(n_tiles,),
        in_specs=[pl.BlockSpec((tile, d), lambda i: (i, 0)),
                  pl.BlockSpec((tile, 1), lambda i: (i, 0)),
                  pl.BlockSpec((b_pad, d), lambda i: (0, 0)),
                  pl.BlockSpec((b_pad, d), lambda i: (0, 0)),
                  pl.BlockSpec((b_pad, 1), lambda i: (0, 0)),
                  pl.BlockSpec((1, d), lambda i: (0, 0)),
                  pl.BlockSpec((1, d), lambda i: (0, 0)),
                  pl.BlockSpec((1, d), lambda i: (0, 0))],
        out_specs=pl.BlockSpec((tile, d), lambda i: (i, 0)),
        compiler_params=_compiler_params(("parallel",)),
    )(x_p, bidx, s1, s2, inv_cnt, ms, w, b)
    return out[:n]


# ----------------------------------------------------------------------------
# Module-level wrapper mirroring the PyTorch NormLayer
# ----------------------------------------------------------------------------

class Graph:
    def __init__(self, batch_num_nodes):
        self.batch_num_nodes = list(batch_num_nodes)


class NormLayer:
    """JAX/Pallas port of the PyTorch NormLayer (forward pass)."""

    def __init__(self, hidden_dim, norm_type, key=None):
        self.norm_type = norm_type
        if key is None:
            key = jax.random.PRNGKey(0)
        k1, k2, k3 = jax.random.split(key, 3)
        if norm_type in ('batchnorm', 'layernorm'):
            self.weight = jnp.ones((hidden_dim,), jnp.float32)
            self.bias = jnp.zeros((hidden_dim,), jnp.float32)
        elif norm_type == 'graphnorm':
            # __init__ values are ones / zeros / ones; perturb deterministically
            # so the affine + mean_scale paths are actually exercised.
            self.weight = 1.0 + 0.1 * jax.random.normal(k1, (hidden_dim,), jnp.float32)
            self.bias = 0.1 * jax.random.normal(k2, (hidden_dim,), jnp.float32)
            self.mean_scale = 1.0 + 0.1 * jax.random.normal(k3, (hidden_dim,), jnp.float32)
        else:
            raise NotImplementedError(norm_type)

    def __call__(self, graph, x):
        if self.norm_type == 'batchnorm':
            return batchnorm_pallas(x, self.weight, self.bias)
        if self.norm_type == 'layernorm':
            return layernorm_pallas(x, self.weight, self.bias)
        return graphnorm_pallas(x, graph.batch_num_nodes,
                                self.weight, self.bias, self.mean_scale)


# ----------------------------------------------------------------------------
# Pure-numpy references (mirror the torch code)
# ----------------------------------------------------------------------------

def graphnorm_ref(x, batch_num_nodes, weight, bias, mean_scale):
    x = np.asarray(x, np.float32)
    counts = np.asarray(batch_num_nodes, np.int64)
    n_graphs, d = counts.shape[0], x.shape[1]
    bidx = np.repeat(np.arange(n_graphs), counts)
    mean = np.zeros((n_graphs, d), np.float32)
    np.add.at(mean, bidx, x)
    mean = mean / counts[:, None]
    sub = x - mean[bidx] * np.asarray(mean_scale, np.float32)
    var = np.zeros((n_graphs, d), np.float32)
    np.add.at(var, bidx, sub ** 2)
    std = np.sqrt(var / counts[:, None] + 1e-6)
    return np.asarray(weight, np.float32) * sub / std[bidx] + np.asarray(bias, np.float32)


def layernorm_ref(x, gamma, beta):
    x = np.asarray(x, np.float32)
    mean = x.mean(-1, keepdims=True)
    var = x.var(-1, keepdims=True)
    return (x - mean) / np.sqrt(var + 1e-5) * np.asarray(gamma) + np.asarray(beta)


def batchnorm_ref(x, gamma, beta):
    x = np.asarray(x, np.float32)
    mean = x.mean(0, keepdims=True)
    var = x.var(0, keepdims=True)
    return (x - mean) / np.sqrt(var + 1e-5) * np.asarray(gamma) + np.asarray(beta)


# ----------------------------------------------------------------------------
# Main
# ----------------------------------------------------------------------------

if __name__ == "__main__":
    hidden_dim = 32
    batch_num_nodes = [3, 5, 4]          # 3 graphs, 12 nodes total
    n_nodes = sum(batch_num_nodes)

    key = jax.random.PRNGKey(0)
    kx, kp, ka, kb = jax.random.split(key, 4)
    x = jax.random.normal(kx, (n_nodes, hidden_dim), jnp.float32)
    graph = Graph(batch_num_nodes)

    # graphnorm (the custom scatter-based hot path)
    gn = NormLayer(hidden_dim, 'graphnorm', key=kp)
    out_gn = jax.block_until_ready(gn(graph, x))
    ref_gn = graphnorm_ref(np.asarray(x), batch_num_nodes,
                           np.asarray(gn.weight), np.asarray(gn.bias),
                           np.asarray(gn.mean_scale))
    np.testing.assert_allclose(np.asarray(out_gn), ref_gn, rtol=1e-4, atol=1e-4)

    # layernorm — exercise the affine path with non-trivial weight/bias
    ln = NormLayer(hidden_dim, 'layernorm')
    ln.weight = 1.0 + 0.1 * jax.random.normal(ka, (hidden_dim,), jnp.float32)
    ln.bias = 0.1 * jax.random.normal(kb, (hidden_dim,), jnp.float32)
    out_ln = jax.block_until_ready(ln(graph, x))
    ref_ln = layernorm_ref(x, np.asarray(ln.weight), np.asarray(ln.bias))
    np.testing.assert_allclose(np.asarray(out_ln), ref_ln, rtol=1e-4, atol=1e-4)

    # batchnorm (training-mode forward)
    bn = NormLayer(hidden_dim, 'batchnorm')
    bn.weight = 1.0 + 0.1 * jax.random.normal(kb, (hidden_dim,), jnp.float32)
    bn.bias = 0.1 * jax.random.normal(ka, (hidden_dim,), jnp.float32)
    out_bn = jax.block_until_ready(bn(graph, x))
    ref_bn = batchnorm_ref(x, np.asarray(bn.weight), np.asarray(bn.bias))
    np.testing.assert_allclose(np.asarray(out_bn), ref_bn, rtol=1e-4, atol=1e-4)

    print("KERNEL_OK")
</pallas_src>

<mosaic_0001>
module attributes {stable_mosaic.version = 11 : i64} {
  func.func @_graphnorm_stats_kernel(%arg0: i32, %arg1: memref<16x32xf32, #tpu.memory_space<vmem>>, %arg2: memref<16x1xi32, #tpu.memory_space<vmem>>, %arg3: memref<8x32xf32, #tpu.memory_space<vmem>>, %arg4: memref<8x32xf32, #tpu.memory_space<vmem>>) attributes {dimension_semantics = [#tpu.dimension_semantics<arbitrary>], iteration_bounds = array<i64: 1>, scalar_prefetch = 0 : i64, scratch_operands = 0 : i64, tpu.core_type = #tpu.core_type<tc>, window_params = [{transform_indices = @transform_0, window_bounds = array<i64: 16, 32>}, {transform_indices = @transform_1, window_bounds = array<i64: 16, 1>}, {pipeline_mode = #tpu.pipeline_mode<synchronous>, transform_indices = @transform_2, window_bounds = array<i64: 8, 32>}, {pipeline_mode = #tpu.pipeline_mode<synchronous>, transform_indices = @transform_3, window_bounds = array<i64: 8, 32>}]} {
    %c0_i32 = arith.constant 0 : i32
    %0 = arith.cmpi eq, %arg0, %c0_i32 : i32
    %1 = arith.extui %0 : i1 to i32
    %c0_i32_0 = arith.constant 0 : i32
    %2 = arith.cmpi ne, %1, %c0_i32_0 : i32
    scf.if %2 {
      %cst_13 = arith.constant 0.000000e+00 : f32
      %19 = vector.broadcast %cst_13 : f32 to vector<8x32xf32>
      %c0_14 = arith.constant 0 : index
      %c0_15 = arith.constant 0 : index
      %20 = vector.load %arg3[%c0_14, %c0_15] : memref<8x32xf32, #tpu.memory_space<vmem>>, vector<8x32xf32>
      tpu.vector_store %arg3[%c0_14, %c0_15], %19 {strides = array<i32>} : memref<8x32xf32, #tpu.memory_space<vmem>>, vector<8x32xf32>,
      %cst_16 = arith.constant 0.000000e+00 : f32
      %21 = vector.broadcast %cst_16 : f32 to vector<8x32xf32>
      %c0_17 = arith.constant 0 : index
      %c0_18 = arith.constant 0 : index
      %22 = vector.load %arg4[%c0_17, %c0_18] : memref<8x32xf32, #tpu.memory_space<vmem>>, vector<8x32xf32>
      tpu.vector_store %arg4[%c0_17, %c0_18], %21 {strides = array<i32>} : memref<8x32xf32, #tpu.memory_space<vmem>>, vector<8x32xf32>,
    } else {
    }
    %c0 = arith.constant 0 : index
    %c0_1 = arith.constant 0 : index
    %3 = vector.load %arg1[%c0, %c0_1] : memref<16x32xf32, #tpu.memory_space<vmem>>, vector<16x32xf32>
    %c0_2 = arith.constant 0 : index
    %c0_3 = arith.constant 0 : index
    %4 = vector.load %arg2[%c0_2, %c0_3] : memref<16x1xi32, #tpu.memory_space<vmem>>, vector<16x1xi32>
    %5 = tpu.iota {dimensions = array<i32: 1>} : vector<16x8xi32>
    %6 = vector.broadcast %4 : vector<16x1xi32> to vector<16x8xi32>
    %7 = arith.cmpi eq, %5, %6 : vector<16x8xi32>
    %8 = arith.extui %7 : vector<16x8xi1> to vector<16x8xi32>
    %9 = arith.sitofp %8 : vector<16x8xi32> to vector<16x8xf32>
    %c0_4 = arith.constant 0 : index
    %c0_5 = arith.constant 0 : index
    %10 = vector.load %arg3[%c0_4, %c0_5] : memref<8x32xf32, #tpu.memory_space<vmem>>, vector<8x32xf32>
    %cst = arith.constant dense<0.000000e+00> : vector<8x32xf32>
    %11 = tpu.matmul %9, %3, %cst {dimension_numbers = #tpu.dot_dimension_numbers<[0], [0], [1], [1], [0, 1, 1, 1], [], []>} : vector<16x8xf32>, vector<16x32xf32>, vector<8x32xf32> -> vector<8x32xf32>
    %12 = arith.addf %10, %11 : vector<8x32xf32>
    %c0_6 = arith.constant 0 : index
    %c0_7 = arith.constant 0 : index
    %13 = vector.load %arg3[%c0_6, %c0_7] : memref<8x32xf32, #tpu.memory_space<vmem>>, vector<8x32xf32>
    tpu.vector_store %arg3[%c0_6, %c0_7], %12 {strides = array<i32>} : memref<8x32xf32, #tpu.memory_space<vmem>>, vector<8x32xf32>,
    %c0_8 = arith.constant 0 : index
    %c0_9 = arith.constant 0 : index
    %14 = vector.load %arg4[%c0_8, %c0_9] : memref<8x32xf32, #tpu.memory_space<vmem>>, vector<8x32xf32>
    %15 = arith.mulf %3, %3 : vector<16x32xf32>
    %cst_10 = arith.constant dense<0.000000e+00> : vector<8x32xf32>
    %16 = tpu.matmul %9, %15, %cst_10 {dimension_numbers = #tpu.dot_dimension_numbers<[0], [0], [1], [1], [0, 1, 1, 1], [], []>} : vector<16x8xf32>, vector<16x32xf32>, vector<8x32xf32> -> vector<8x32xf32>
    %17 = arith.addf %14, %16 : vector<8x32xf32>
    %c0_11 = arith.constant 0 : index
    %c0_12 = arith.constant 0 : index
    %18 = vector.load %arg4[%c0_11, %c0_12] : memref<8x32xf32, #tpu.memory_space<vmem>>, vector<8x32xf32>
    tpu.vector_store %arg4[%c0_11, %c0_12], %17 {strides = array<i32>} : memref<8x32xf32, #tpu.memory_space<vmem>>, vector<8x32xf32>,
    return
  }
  func.func @transform_0(%arg0: i32) -> (i32, i32) {
    %c0_i32 = arith.constant 0 : i32
    %c0_i32_0 = arith.constant 0 : i32
    return %arg0, %c0_i32 : i32, i32
  }
  func.func @transform_1(%arg0: i32) -> (i32, i32) {
    %c0_i32 = arith.constant 0 : i32
    %c0_i32_0 = arith.constant 0 : i32
    return %arg0, %c0_i32 : i32, i32
  }
  func.func @transform_2(%arg0: i32) -> (i32, i32) {
    %c0_i32 = arith.constant 0 : i32
    %c0_i32_0 = arith.constant 0 : i32
    %c0_i32_1 = arith.constant 0 : i32
    return %c0_i32, %c0_i32_0 : i32, i32
  }
  func.func @transform_3(%arg0: i32) -> (i32, i32) {
    %c0_i32 = arith.constant 0 : i32
    %c0_i32_0 = arith.constant 0 : i32
    %c0_i32_1 = arith.constant 0 : i32
    return %c0_i32, %c0_i32_0 : i32, i32
  }
}

</mosaic_0001>

<llo_original>
// kernel: tpu_custom_call.1
$region0: #{tpu_custom_call.1}
  #allocation0 [shape = 'u32[]', space=smem, size = 0x4, offset = 0x4, fixed_abs, tag = 'smem constant byte address 0x4 - core index']
  #allocation1 [shape = 'u32[144,128]{1,0:T(1,128)}', space=vmem, size = 0x12000, scoped, tag = 'internal scratch']
  %s0 = inlined_call_operand.vmem [shape: f32[16,32], index: 0, kind: input, shape index: {}]
  %s1 = inlined_call_operand.vmem [shape: s32[16,1], index: 1, kind: input, shape index: {}]
  %s2 = inlined_call_operand.hbm [shape: f32[8,32], index: 2, kind: output, shape index: {0}]
  %s3 = inlined_call_operand.hbm [shape: f32[8,32], index: 3, kind: output, shape index: {1}]
  %4 = xla_tuple %s2, %s3
  %s5 = sld [smem:[#allocation0]]
  $region30: #{tpu_custom_call.1} parent=0
    _
  %s7 = ssub.s32 1, %s5
  %s8 = scalar_select 0, %s7, %s5
  $region1: #{tpu_custom_call.1} parent=0
    #allocation2 [shape = 'u8[4096]{0}', space=vmem, size = 0x1000, scoped, tag = 'output window, operand 0, single buffered']
    #allocation3 [shape = 's32[1]{0}', space=sflag, size = 0x4, scoped, tag = 'scoped memory for tpu_custom_call.1']
    #allocation4 [shape = 'u8[4096]{0}', space=vmem, size = 0x1000, scoped, tag = 'output window, operand 1, single buffered']
    #allocation5 [shape = 's32[1]{0}', space=sflag, size = 0x4, scoped, tag = 'scoped memory for tpu_custom_call.1']
    %9 = vsyncpa [#allocation3], 0
    %10 = vsyncpa [#allocation5], 0
    // Predicated region
    $region2: #{tpu_custom_call.1} parent=1 // pred_check
      _
    $region3: #{tpu_custom_call.1} parent=1 // pred_check_branch
      %12 = sbr.rel (0) target = $region5
    $region4: #{tpu_custom_call.1} parent=1 // pred_region
      _
    $region5: #{tpu_custom_call.1} parent=1 // pred_fallthru
      _
    // Predicated region
    $region6: #{tpu_custom_call.1} parent=1 // pred_check
      _
    $region7: #{tpu_custom_call.1} parent=1 // pred_check_branch
      %14 = sbr.rel (0) target = $region9
    $region8: #{tpu_custom_call.1} parent=1 // pred_region
      _
    $region9: #{tpu_custom_call.1} parent=1 // pred_fallthru
      _
    %p15 = scmp.eq.s32.totalorder 0, 0
    // Predicated region
    $region10: #{tpu_custom_call.1} parent=1 // pred_check
      %p16 = pneg %p15
    $region11: #{tpu_custom_call.1} parent=1 // pred_check_branch
      %18 = sbr.rel (%p16) target = $region13
    $region12: #{tpu_custom_call.1} parent=1 // pred_region
      %vm19 = vcmask 261120
      %20 = vst.msk [vmem:[#allocation2] sm:$0xff] %vm19, 0.0
      %21 = vst.msk [vmem:[#allocation4] sm:$0xff] %vm19, 0.0
    $region13: #{tpu_custom_call.1} parent=1 // pred_fallthru
      _
    %v22 = vld [vmem:[%s0] sm:$0xff]
    %v23 = vld [vmem:[%s0 + $0x8] sm:$0xff]
    %v24 = vld [vmem:[%s1] sm:$0xff]
    %v25 = vld [vmem:[%s1 + $0x8] sm:$0xff]
    %v26 = vlaneseq
    %v27 = vand.u32 %v26, 127
    %28 = vset.pattern.permute.xlu0 0
    %29 = vperm.xlu0 %28, %v24
    %v30 = vpop.permute.xlu0 %29
    %31 = vset.pattern.permute.xlu0 0
    %32 = vperm.xlu0 %31, %v25
    %v33 = vpop.permute.xlu0 %32
    %vm34 = vcmp.eq.s32.totalorder %v27, %v30
    %vm35 = vcmp.eq.s32.totalorder %v27, %v33
    %v36 = vsel %vm34, 1, 0
    %v37 = vsel %vm35, 1, 0
    %v38 = vcvt.s32.f32 %v36
    %v39 = vcvt.s32.f32 %v37
    %v40 = vld [vmem:[#allocation2] sm:$0xff]
    %41 = vxpose.xlu0.b32.start [1/16] %v38, 128
    %42 = vxpose.xlu0.b32.cont [2/16] %v39, 128
    %43 = vxpose.xlu0.b32.cont [3/16] 0.0, 128
    %44 = vxpose.xlu0.b32.cont [4/16] 0.0, 128
    %45 = vxpose.xlu0.b32.cont [5/16] 0.0, 128
    %46 = vxpose.xlu0.b32.cont [6/16] 0.0, 128
    %47 = vxpose.xlu0.b32.cont [7/16] 0.0, 128
    %48 = vxpose.xlu0.b32.cont [8/16] 0.0, 128
    %49 = vxpose.xlu0.b32.cont [9/16] 0.0, 128
    %50 = vxpose.xlu0.b32.cont [10/16] 0.0, 128
    %51 = vxpose.xlu0.b32.cont [11/16] 0.0, 128
    %52 = vxpose.xlu0.b32.cont [12/16] 0.0, 128
    %53 = vxpose.xlu0.b32.cont [13/16] 0.0, 128
    %54 = vxpose.xlu0.b32.cont [14/16] 0.0, 128
    %55 = vxpose.xlu0.b32.cont [15/16] 0.0, 128
    %56 = vxpose.xlu0.b32.end [16/16] 0.0, 128
    %v57 = vpop.trf.xlu0
    %v58 = vpop.trf.xlu0
    %v59 = vpop.trf.xlu0
    %v60 = vpop.trf.xlu0
    %v61 = vpop.trf.xlu0
    %v62 = vpop.trf.xlu0
    %v63 = vpop.trf.xlu0
    %v64 = vpop.trf.xlu0
    %v65 = vpop.trf.xlu0
    %v66 = vpop.trf.xlu0
    %v67 = vpop.trf.xlu0
    %v68 = vpop.trf.xlu0
    %v69 = vpop.trf.xlu0
    %v70 = vpop.trf.xlu0
    %v71 = vpop.trf.xlu0
    %v72 = vpop.trf.xlu0
    %vm73 = vcmask 130048
    %v75 = vsel %vm73, %v57, 0
    %77 = vmatprep.subr.mxu0 0.0
    %78 = vmatpush1.msra.mxu0 %v22
    %79 = vmatprep.subr.mxu0 0.0
    %80 = vmatpush1.msra.mxu0 %v23
    %81 = vmatprep.subr.mxu0 0.0
    %82 = vmatpush1.msra.mxu0 0.0
    %83 = vmatprep.subr.mxu0 0.0
    %84 = vmatpush1.msra.mxu0 0.0
    %85 = vmatprep.subr.mxu0 0.0
    %86 = vmatpush1.msra.mxu0 0.0
    %87 = vmatprep.subr.mxu0 0.0
    %88 = vmatpush1.msra.mxu0 0.0
    %89 = vmatprep.subr.mxu0 0.0
    %90 = vmatpush1.msra.mxu0 0.0
    %91 = vmatprep.subr.mxu0 0.0
    %92 = vmatpush1.msra.mxu0 0.0
    %93 = vmatprep.subr.mxu0 0.0
    %94 = vmatpush1.msra.mxu0 0.0
    %95 = vmatprep.subr.mxu0 0.0
    %96 = vmatpush1.msra.mxu0 0.0
    %97 = vmatprep.subr.mxu0 0.0
    %98 = vmatpush1.msra.mxu0 0.0
    %99 = vmatprep.subr.mxu0 0.0
    %100 = vmatpush1.msra.mxu0 0.0
    %101 = vmatprep.subr.mxu0 0.0
    %102 = vmatpush1.msra.mxu0 0.0
    %103 = vmatprep.subr.mxu0 0.0
    %104 = vmatpush1.msra.mxu0 0.0
    %105 = vmatprep.subr.mxu0 0.0
    %106 = vmatpush1.msra.mxu0 0.0
    %107 = vmatprep.subr.mxu0 0.0
    %108 = vmatpush1.msra.mxu0 0.0
    %109 = vmatprep.subr.mxu0 0.0
    %110 = vmatpush1.msra.mxu0 0.0
    %111 = vmatprep.subr.mxu0 0.0
    %112 = vmatpush1.msra.mxu0 0.0
    %113 = vmatprep.subr.mxu0 0.0
    %114 = vmatpush1.msra.mxu0 0.0
    %115 = vmatprep.subr.mxu0 0.0
    %116 = vmatpush1.msra.mxu0 0.0
    %117 = vmatprep.subr.mxu0 0.0
    %118 = vmatpush1.msra.mxu0 0.0
    %119 = vmatprep.subr.mxu0 0.0
    %120 = vmatpush1.msra.mxu0 0.0
    %121 = vmatprep.subr.mxu0 0.0
    %122 = vmatpush1.msra.mxu0 0.0
    %123 = vmatprep.subr.mxu0 0.0
    %124 = vmatpush1.msra.mxu0 0.0
    %125 = vmatprep.subr.mxu0 0.0
    %126 = vmatpush1.msra.mxu0 0.0
    %127 = vmatprep.subr.mxu0 0.0
    %128 = vmatpush1.msra.mxu0 0.0
    %129 = vmatprep.subr.mxu0 0.0
    %130 = vmatpush1.msra.mxu0 0.0
    %131 = vmatprep.subr.mxu0 0.0
    %132 = vmatpush1.msra.mxu0 0.0
    %133 = vmatprep.subr.mxu0 0.0
    %134 = vmatpush1.msra.mxu0 0.0
    %135 = vmatprep.subr.mxu0 0.0
    %136 = vmatpush1.msra.mxu0 0.0
    %137 = vmatprep.subr.mxu0 0.0
    %138 = vmatpush1.msra.mxu0 0.0
    %139 = vmatprep.subr.mxu0 0.0
    %140 = vmatpush1.msra.mxu0 0.0
    %141 = vmatprep.mubr.f32.mxu0 0.0
    %142 = vmatmul.mubr.f32.gmra.mrb[0].mxu0 %v75
    %v143 = vpop.f32.mrb[0].mxu0
    %v144 = vadd.f32 0.0, %v143
    %v145 = vpop.f32.mrb[0].mxu0
    %146 = vdwg.mxu0
    %v147 = vadd.f32 %v40, %v144
    %vm148 = vcmask 261120
    %149 = vst.msk [vmem:[#allocation2] sm:$0xff] %vm148, %v147
    %v150 = vld [vmem:[#allocation4] sm:$0xff]
    %v151 = vmul.f32 %v22, %v22
    %v152 = vmul.f32 %v23, %v23
    %153 = vmatprep.subr.mxu0 0.0
    %154 = vmatpush1.msra.mxu0 %v151
    %155 = vmatprep.subr.mxu0 0.0
    %156 = vmatpush1.msra.mxu0 %v152
    %157 = vmatprep.subr.mxu0 0.0
    %158 = vmatpush1.msra.mxu0 0.0
    %159 = vmatprep.subr.mxu0 0.0
    %160 = vmatpush1.msra.mxu0 0.0
    %161 = vmatprep.subr.mxu0 0.0
    %162 = vmatpush1.msra.mxu0 0.0
    %163 = vmatprep.subr.mxu0 0.0
    %164 = vmatpush1.msra.mxu0 0.0
    %165 = vmatprep.subr.mxu0 0.0
    %166 = vmatpush1.msra.mxu0 0.0
    %167 = vmatprep.subr.mxu0 0.0
    %168 = vmatpush1.msra.mxu0 0.0
    %169 = vmatprep.subr.mxu0 0.0
    %170 = vmatpush1.msra.mxu0 0.0
    %171 = vmatprep.subr.mxu0 0.0
    %172 = vmatpush1.msra.mxu0 0.0
    %173 = vmatprep.subr.mxu0 0.0
    %174 = vmatpush1.msra.mxu0 0.0
    %175 = vmatprep.subr.mxu0 0.0
    %176 = vmatpush1.msra.mxu0 0.0
    %177 = vmatprep.subr.mxu0 0.0
    %178 = vmatpush1.msra.mxu0 0.0
    %179 = vmatprep.subr.mxu0 0.0
    %180 = vmatpush1.msra.mxu0 0.0
    %181 = vmatprep.subr.mxu0 0.0
    %182 = vmatpush1.msra.mxu0 0.0
    %183 = vmatprep.subr.mxu0 0.0
    %184 = vmatpush1.msra.mxu0 0.0
    %185 = vmatprep.subr.mxu0 0.0
    %186 = vmatpush1.msra.mxu0 0.0
    %187 = vmatprep.subr.mxu0 0.0
    %188 = vmatpush1.msra.mxu0 0.0
    %189 = vmatprep.subr.mxu0 0.0
    %190 = vmatpush1.msra.mxu0 0.0
    %191 = vmatprep.subr.mxu0 0.0
    %192 = vmatpush1.msra.mxu0 0.0
    %193 = vmatprep.subr.mxu0 0.0
    %194 = vmatpush1.msra.mxu0 0.0
    %195 = vmatprep.subr.mxu0 0.0
    %196 = vmatpush1.msra.mxu0 0.0
    %197 = vmatprep.subr.mxu0 0.0
    %198 = vmatpush1.msra.mxu0 0.0
    %199 = vmatprep.subr.mxu0 0.0
    %200 = vmatpush1.msra.mxu0 0.0
    %201 = vmatprep.subr.mxu0 0.0
    %202 = vmatpush1.msra.mxu0 0.0
    %203 = vmatprep.subr.mxu0 0.0
    %204 = vmatpush1.msra.mxu0 0.0
    %205 = vmatprep.subr.mxu0 0.0
    %206 = vmatpush1.msra.mxu0 0.0
    %207 = vmatprep.subr.mxu0 0.0
    %208 = vmatpush1.msra.mxu0 0.0
    %209 = vmatprep.subr.mxu0 0.0
    %210 = vmatpush1.msra.mxu0 0.0
    %211 = vmatprep.subr.mxu0 0.0
    %212 = vmatpush1.msra.mxu0 0.0
    %213 = vmatprep.subr.mxu0 0.0
    %214 = vmatpush1.msra.mxu0 0.0
    %215 = vmatprep.subr.mxu0 0.0
    %216 = vmatpush1.msra.mxu0 0.0
    %217 = vmatprep.mubr.f32.mxu0 0.0
    %218 = vmatmul.mubr.f32.gmra.mrb[0].mxu0 %v75
    %v219 = vpop.f32.mrb[0].mxu0
    %v220 = vadd.f32 0.0, %v219
    %v221 = vpop.f32.mrb[0].mxu0
    %222 = vdwg.mxu0
    %v223 = vadd.f32 %v150, %v220
    %224 = vst.msk [vmem:[#allocation4] sm:$0xff] %vm148, %v223
    // Predicated region
    $region14: #{tpu_custom_call.1} parent=1 // pred_check
      _
    $region15: #{tpu_custom_call.1} parent=1 // pred_check_branch
      %226 = sbr.rel (0) target = $region17
    $region16: #{tpu_custom_call.1} parent=1 // pred_region
      %s228 = ssub.s32 128, 128
      %229 = vsyncadd [#allocation3], %s228
      %s231 = sshll.u32 [#allocation2], 4
      %s232 = int_to_ptr.vmem [resolvable:$true] %s231
      %234 = dma.vmem_to_hbm [thread:$0]  %s232, 128, %s2, [#allocation3]
    $region17: #{tpu_custom_call.1} parent=1 // pred_fallthru
      _
    // Predicated region
    $region18: #{tpu_custom_call.1} parent=1 // pred_check
      _
    $region19: #{tpu_custom_call.1} parent=1 // pred_check_branch
      %236 = sbr.rel (0) target = $region21
    $region20: #{tpu_custom_call.1} parent=1 // pred_region
      %s238 = ssub.s32 128, 128
      %239 = vsyncadd [#allocation5], %s238
      %s241 = sshll.u32 [#allocation4], 4
      %s242 = int_to_ptr.vmem [resolvable:$true] %s241
      %244 = dma.vmem_to_hbm [thread:$0]  %s242, 128, %s3, [#allocation5]
    $region21: #{tpu_custom_call.1} parent=1 // pred_fallthru
      _
    // Predicated region
    $region22: #{tpu_custom_call.1} parent=1 // pred_check
      _
    $region23: #{tpu_custom_call.1} parent=1 // pred_check_branch
      %246 = sbr.rel (0) target = $region25
    $region24: #{tpu_custom_call.1} parent=1 // pred_region
      %247 = dma.done [#allocation3], 128
    $region25: #{tpu_custom_call.1} parent=1 // pred_fallthru
      _
    // Predicated region
    $region26: #{tpu_custom_call.1} parent=1 // pred_check
      _
    $region27: #{tpu_custom_call.1} parent=1 // pred_check_branch
      %249 = sbr.rel (0) target = $region29
    $region28: #{tpu_custom_call.1} parent=1 // pred_region
      %250 = dma.done [#allocation5], 128
    $region29: #{tpu_custom_call.1} parent=1 // pred_fallthru
      _
    %251 = vsyncpa [#allocation3], 1
    %252 = vsyncpa [#allocation5], 1

</llo_original>
